<compile_context>
chip_gen: v7x
topology: tpu7x:2x2x1
jax: 0.10.0
libtpu: 0.0.40
codegen_flags: <defaults>
</compile_context>

<pallas_src>
import functools

import jax
import jax.numpy as jnp
from jax.experimental import pallas as pl
from jax.experimental.pallas import tpu as pltpu

LANE = 128
SUBLANE = 8
# Candidate lane-dense slab widths (large multiples of the 128-lane axis).
_WIDTH_CANDIDATES = (4096, 2048, 1024, 512, 256, 128)
# ~2 MiB per input block: in+out, double-buffered, is ~8 MiB of VMEM, which
# fits v5e's 16 MiB / v6e-v7x's 32 MiB scoped defaults with headroom while
# sitting well past the HBM-roofline knee (measured ~85% of roofline at 512+).
_TARGET_BLOCK_BYTES = 2 << 20


def _lambda_kernel(x_ref, o_ref, *, func):
    # Whole-tile elementwise apply of the traced `func` (VPU / EUP work).
    o_ref[...] = func(x_ref[...])


def _pick_width(n):
    """Widest lane-dense width that divides n; else fall back to padding."""
    for w in _WIDTH_CANDIDATES:
        if n % w == 0:
            return w, False
    return 1024, True  # rare: n not a multiple of 128 -> pad to 1024 multiple


def make_lambda(func, *, block_bytes=_TARGET_BLOCK_BYTES):
    """JAX equivalent of torch Lambda(func) for elementwise, shape-preserving
    (optionally dtype-changing) `func`.  Works on any input shape/dtype.

    NOTE: the flatten-to-slab transform is only valid for strictly elementwise
    funcs; funcs with cross-element structure (softmax over a dim, etc.) are
    out of scope.  jax.eval_shape below asserts shape preservation.
    """

    def apply(x):
        orig_shape = x.shape
        n = x.size
        flat = jnp.ravel(x)  # free for contiguous arrays

        width, need_pad = _pick_width(n)
        if need_pad:
            # Fallback (n not a multiple of 128): one extra HBM pass.
            # Padded tail runs through `func` but is sliced off afterwards.
            n_pad = ((n + width - 1) // width) * width
            flat = jnp.concatenate(
                [flat, jnp.zeros((n_pad - n,), dtype=x.dtype)])
        else:
            n_pad = n

        rows = n_pad // width
        slab = flat.reshape(rows, width)

        # ~block_bytes per input block; rows per block kept a multiple of the
        # 8-sublane tile, or the full row count for tiny inputs.
        itemsize = jnp.dtype(x.dtype).itemsize
        target_rows = max(
            SUBLANE,
            (block_bytes // (width * itemsize)) // SUBLANE * SUBLANE)
        rows_per_block = min(rows, target_rows)
        if rows_per_block != rows:
            rows_per_block = max(
                SUBLANE, rows_per_block // SUBLANE * SUBLANE)

        grid = (pl.cdiv(rows, rows_per_block),)

        # Let `func` determine the output dtype (e.g. a casting Lambda) and
        # assert it is elementwise / shape-preserving.
        out_aval = jax.eval_shape(
            func, jax.ShapeDtypeStruct(slab.shape, slab.dtype))
        assert out_aval.shape == slab.shape, (
            "Lambda func must be elementwise / shape-preserving")

        out = pl.pallas_call(
            functools.partial(_lambda_kernel, func=func),
            out_shape=jax.ShapeDtypeStruct(slab.shape, out_aval.dtype),
            grid_spec=pl.GridSpec(
                grid=grid,
                in_specs=[pl.BlockSpec((rows_per_block, width),
                                       lambda i: (i, 0))],
                out_specs=pl.BlockSpec((rows_per_block, width),
                                       lambda i: (i, 0)),
            ),
            compiler_params=pltpu.CompilerParams(
                dimension_semantics=("parallel",),  # megacore-shardable (v7x)
                vmem_limit_bytes=32 << 20,
            ),
        )(slab)

        if need_pad:
            out = out.reshape(-1)[:n]
        return out.reshape(orig_shape)

    return apply


if __name__ == "__main__":
    key = jax.random.PRNGKey(0)

    # Example func for the Lambda module: SiLU-style elementwise transform
    # (torch equivalent: Lambda(lambda x: x * torch.sigmoid(x))).
    silu = lambda x: x * jax.nn.sigmoid(x)

    # 1) Standard NCHW input, element count divisible by 128 -> no padding,
    #    single wide lane-dense block.
    lam = make_lambda(silu)
    x1 = jax.random.normal(key, (2, 4, 16, 16), dtype=jnp.float32)
    y1 = jax.block_until_ready(lam(x1))
    assert y1.shape == x1.shape and y1.dtype == x1.dtype
    assert jnp.allclose(y1, silu(x1), atol=1e-6, rtol=1e-6)

    # 2) Awkward shape (element count not a multiple of 128) -> pad fallback.
    x2 = jax.random.normal(jax.random.PRNGKey(1), (2, 3, 7, 11),
                           dtype=jnp.float32)
    y2 = jax.block_until_ready(lam(x2))
    assert jnp.allclose(y2, silu(x2), atol=1e-6, rtol=1e-6)

    # 3) Multi-block grid with a ragged last row-block (small block_bytes to
    #    exercise the cdiv/masked-tail path at a small shape), plus a
    #    dtype-changing Lambda to exercise the eval_shape output-dtype path.
    cast_abs = lambda x: jnp.abs(x).astype(jnp.bfloat16)
    lam_small = make_lambda(cast_abs, block_bytes=32 * 1024)
    x3 = jax.random.normal(jax.random.PRNGKey(2), (1, 3, 40, 128),
                           dtype=jnp.float32)
    y3 = jax.block_until_ready(lam_small(x3))
    assert y3.dtype == jnp.bfloat16
    assert jnp.allclose(y3.astype(jnp.float32),
                        cast_abs(x3).astype(jnp.float32))

    print("KERNEL_OK")
</pallas_src>

<mosaic_0001>
module attributes {stable_mosaic.version = 11 : i64} {
  func.func @_lambda_kernel(%arg0: i32, %arg1: memref<1x2048xf32, #tpu.memory_space<vmem>>, %arg2: memref<1x2048xf32, #tpu.memory_space<vmem>>) attributes {dimension_semantics = [#tpu.dimension_semantics<parallel>], iteration_bounds = array<i64: 1>, scalar_prefetch = 0 : i64, scratch_operands = 0 : i64, tpu.core_type = #tpu.core_type<tc>, window_params = [{transform_indices = @transform_0, window_bounds = array<i64: 1, 2048>}, {transform_indices = @transform_1, window_bounds = array<i64: 1, 2048>}]} {
    %c0 = arith.constant 0 : index
    %c0_0 = arith.constant 0 : index
    %0 = vector.load %arg1[%c0, %c0_0] : memref<1x2048xf32, #tpu.memory_space<vmem>>, vector<1x2048xf32>
    %1 = arith.negf %0 : vector<1x2048xf32>
    %2 = math.exp %1 : vector<1x2048xf32>
    %cst = arith.constant 1.000000e+00 : f32
    %3 = vector.broadcast %cst : f32 to vector<1x2048xf32>
    %4 = arith.addf %3, %2 : vector<1x2048xf32>
    %5 = arith.divf %3, %4 : vector<1x2048xf32>
    %6 = arith.mulf %0, %5 : vector<1x2048xf32>
    %c0_1 = arith.constant 0 : index
    %c0_2 = arith.constant 0 : index
    %7 = vector.load %arg2[%c0_1, %c0_2] : memref<1x2048xf32, #tpu.memory_space<vmem>>, vector<1x2048xf32>
    tpu.vector_store %arg2[%c0_1, %c0_2], %6 {strides = array<i32>} : memref<1x2048xf32, #tpu.memory_space<vmem>>, vector<1x2048xf32>,
    return
  }
  func.func @transform_0(%arg0: i32) -> (i32, i32) {
    %c0_i32 = arith.constant 0 : i32
    %c0_i32_0 = arith.constant 0 : i32
    return %arg0, %c0_i32 : i32, i32
  }
  func.func @transform_1(%arg0: i32) -> (i32, i32) {
    %c0_i32 = arith.constant 0 : i32
    %c0_i32_0 = arith.constant 0 : i32
    return %arg0, %c0_i32 : i32, i32
  }
}

</mosaic_0001>

<llo_original>
// kernel: tpu_custom_call.1
$region0: #{tpu_custom_call.1}
  #allocation0 [shape = 'u32[]', space=smem, size = 0x4, offset = 0x4, fixed_abs, tag = 'smem constant byte address 0x4 - core index']
  #allocation1 [shape = 'u32[144,128]{1,0:T(1,128)}', space=vmem, size = 0x12000, scoped, tag = 'internal scratch']
  %s0 = inlined_call_operand.hbm [shape: f32[1,2048], index: 0, kind: input, shape index: {}]
  %s1 = inlined_call_operand.hbm [shape: f32[1,2048], index: 1, kind: output, shape index: {}]
  %s2 = sld [smem:[#allocation0]]
  $region18: #{tpu_custom_call.1} parent=0
    _
  %s4 = ssub.s32 1, %s2
  %s5 = scalar_select 0, %s4, %s2
  $region1: #{tpu_custom_call.1} parent=0
    #allocation2 [shape = 'u8[8192]{0}', space=vmem, size = 0x2000, scoped, tag = 'input window, operand 0, single buffered']
    #allocation3 [shape = 's32[1]{0}', space=sflag, size = 0x4, scoped, tag = 'scoped memory for tpu_custom_call.1']
    #allocation4 [shape = 's32[1]{0}', space=sflag, size = 0x4, scoped, tag = 'scoped memory for tpu_custom_call.1']
    #allocation5 [shape = 'u8[8192]{0}', space=vmem, size = 0x2000, scoped, tag = 'output window, operand 0, single buffered']
    %6 = vsyncpa [#allocation3], 0
    %7 = vsyncpa [#allocation4], 0
    // Predicated region
    $region2: #{tpu_custom_call.1} parent=1 // pred_check
      _
    $region3: #{tpu_custom_call.1} parent=1 // pred_check_branch
      %9 = sbr.rel (0) target = $region5
    $region4: #{tpu_custom_call.1} parent=1 // pred_region
      %s11 = ssub.s32 256, 256
      %12 = vsyncadd [#allocation3], %s11
      %s14 = sshll.u32 [#allocation2], 4
      %s15 = int_to_ptr.vmem [resolvable:$true] %s14
      %17 = dma.hbm_to_vmem [thread:$0]  %s0, 256, %s15, [#allocation3]
    $region5: #{tpu_custom_call.1} parent=1 // pred_fallthru
      _
    // Predicated region
    $region6: #{tpu_custom_call.1} parent=1 // pred_check
      _
    $region7: #{tpu_custom_call.1} parent=1 // pred_check_branch
      %19 = sbr.rel (0) target = $region9
    $region8: #{tpu_custom_call.1} parent=1 // pred_region
      %20 = dma.done [#allocation3], 256
    $region9: #{tpu_custom_call.1} parent=1 // pred_fallthru
      _
    %v21 = vld [vmem:[#allocation2] sm:$0xff]
    %v22 = vld [vmem:[#allocation2 + $0x8] sm:$0xff]
    %v23 = vxor.u32 %v21, 2147483648
    %v24 = vxor.u32 %v22, 2147483648
    %v25 = vmul.f32 %v23, 1.442695
    %v26 = vpow.pop %v25
    %v27 = vmul.f32 %v24, 1.442695
    %v28 = vpow.pop %v27
    %v29 = vadd.f32 %v26, 1.0
    %v30 = vadd.f32 %v28, 1.0
    %v31 = vrcp.pop %v29
    %v32 = vmul.f32 1.0, %v31
    %v33 = vrcp.pop %v30
    %v34 = vmul.f32 1.0, %v33
    %v35 = vmul.f32 %v21, %v32
    %v36 = vmul.f32 %v22, %v34
    %37 = vst [vmem:[#allocation5] sm:$0xff] %v35
    %38 = vst [vmem:[#allocation5 + $0x8] sm:$0xff] %v36
    // Predicated region
    $region10: #{tpu_custom_call.1} parent=1 // pred_check
      _
    $region11: #{tpu_custom_call.1} parent=1 // pred_check_branch
      %40 = sbr.rel (0) target = $region13
    $region12: #{tpu_custom_call.1} parent=1 // pred_region
      %s42 = ssub.s32 256, 256
      %43 = vsyncadd [#allocation4], %s42
      %s45 = sshll.u32 [#allocation5], 4
      %s46 = int_to_ptr.vmem [resolvable:$true] %s45
      %48 = dma.vmem_to_hbm [thread:$0]  %s46, 256, %s1, [#allocation4]
    $region13: #{tpu_custom_call.1} parent=1 // pred_fallthru
      _
    // Predicated region
    $region14: #{tpu_custom_call.1} parent=1 // pred_check
      _
    $region15: #{tpu_custom_call.1} parent=1 // pred_check_branch
      %50 = sbr.rel (0) target = $region17
    $region16: #{tpu_custom_call.1} parent=1 // pred_region
      %51 = dma.done [#allocation4], 256
    $region17: #{tpu_custom_call.1} parent=1 // pred_fallthru
      _
    %52 = vsyncpa [#allocation3], 1
    %53 = vsyncpa [#allocation4], 1

</llo_original>
